<compile_context>
chip_gen: v7x
topology: tpu7x:2x2x1
jax: 0.10.0
libtpu: 0.0.40
codegen_flags: <defaults>
</compile_context>

<pallas_src>
import functools

import jax
import jax.numpy as jnp
import numpy as np
from jax.experimental import pallas as pl
from jax.experimental.pallas import tpu as pltpu


# ---------------------------------------------------------------------------
# Kernel
# ---------------------------------------------------------------------------
def _mlmmoe_kernel(hid_ref, w_ref, b_ref, out_ref, *, n_expert, num_task):
    """One batch tile: fused gate logits + folded expert/level/tower scalars + softmax mix."""
    E, T = n_expert, num_task
    TE = T * E
    f32 = jnp.float32

    x = hid_ref[...].astype(f32)                                   # bf16 HBM tile -> f32 compute
    # Single lane-dense matmul: columns [0, TE) are gate logits, [TE, 2*TE) are the
    # per-(task, expert) scalars with the whole tower (and its bias) folded in.
    y = jnp.dot(x, w_ref[...], preferred_element_type=f32) + b_ref[...]

    cols = []
    for t in range(T):                                             # T, E tiny -> static unroll
        gl = y[:, t * E:(t + 1) * E]
        gl = gl - jnp.max(gl, axis=-1, keepdims=True)
        pe = jnp.exp(gl)
        gate = pe * pl.reciprocal(jnp.sum(pe, axis=-1, keepdims=True), approx=True)  # softmax
        sv = y[:, TE + t * E:TE + (t + 1) * E]                     # folded tower scalars
        logit = jnp.sum(gate * sv, axis=-1, keepdims=True)         # gate weights sum to 1
        cols.append(pl.reciprocal(1.0 + jnp.exp(-logit), approx=True))               # sigmoid
    out_ref[...] = jnp.concatenate(cols, axis=-1).astype(out_ref.dtype)


def _const_spec(shape):
    # Grid-invariant (VMEM-resident) parameter block.
    return pl.BlockSpec(shape, lambda *_: (0,) * len(shape))


def _choose_block_b(B, block_b):
    """Large batch tiles, but keep >= 2 grid steps (v7x dual-TC) and 8-row alignment."""
    bb = min(block_b, B)
    half = (B + 1) // 2
    if half >= 8:
        bb = min(bb, ((half + 7) // 8) * 8)
    if bb % 8 != 0:          # tiny/odd batches: fall back to a single full-array block
        bb = B
    return max(bb, 1)


# ---------------------------------------------------------------------------
# Wrapper: constant-parameter precompute (tiny, batch-independent) + pallas_call
# ---------------------------------------------------------------------------
def mlmmoe_forward(hidden, params, *, n_expert, mmoe_hidden_dim, num_task,
                   hidden_dim, block_b=1024, cast_hidden_bf16=True):
    """MLMMOE forward (post-embedding, eval-mode) via one fused, batch-blocked Pallas kernel."""
    B, H = hidden.shape
    E, M, T = n_expert, mmoe_hidden_dim, num_task
    TE = T * E
    eps = 1e-5                                  # torch.nn.BatchNorm1d default
    f32 = jnp.float32

    # Level-gate softmaxes: column e is softmax(level_gate_e).
    G = jax.nn.softmax(params['level_gates'].astype(f32), axis=0)              # (E, E)

    wcols, bcols = [], []
    # --- block 1: task-gate logits, task-major ---
    for t in range(T):
        wcols.append(params['gates'][t].astype(f32))                          # (H, E)
        bcols.append(params['gates_bias'][t].astype(f32))                     # (E,)
    # --- block 2: per-(task, expert) scalars with the tower folded to one affine map ---
    for t in range(T):
        Wc = jnp.eye(M, dtype=f32)
        bc = jnp.zeros((M,), f32)
        for j in range(len(hidden_dim)):
            lw, lb = params['towers'][t]['linear'][j]                          # (out,in), (out,)
            gamma, beta, mean, var = params['towers'][t]['bn'][j]              # eval-mode stats
            scale = gamma / jnp.sqrt(var + eps)
            Wj = lw.T * scale[None, :]                                         # BN folded in
            bj = lb * scale + beta - mean * scale
            Wc = Wc @ Wj
            bc = bc @ Wj + bj
        lw_last, lb_last = params['towers'][t]['linear'][-1]                   # (1, d_last), (1,)
        w_t = (Wc @ lw_last.T)[:, 0]                                           # (M,)
        b_t = (bc @ lw_last.T)[0] + lb_last[0]                                 # scalar
        U_t = jnp.einsum('jme,m->je', params['experts'].astype(f32), w_t)      # (H, E)
        u0_t = w_t @ params['experts_bias'].astype(f32)                        # (E,)
        wcols.append(U_t @ G)                                                  # level gates folded
        bcols.append(u0_t @ G + b_t)                                           # tower bias folded

    W_cat = jnp.concatenate(wcols, axis=1)                                     # (H, 2*T*E)
    b_cat = jnp.concatenate(bcols)[None, :]                                    # (1, 2*T*E)
    ncols = max(128, ((2 * TE + 127) // 128) * 128)                            # lane-dense pad
    W_cat = jnp.pad(W_cat, ((0, 0), (0, ncols - W_cat.shape[1])))
    b_cat = jnp.pad(b_cat, ((0, 0), (0, ncols - b_cat.shape[1])))

    x_in = hidden.astype(jnp.bfloat16) if cast_hidden_bf16 else hidden         # halve HBM traffic

    bb = _choose_block_b(B, block_b)
    kernel = functools.partial(_mlmmoe_kernel, n_expert=E, num_task=T)
    return pl.pallas_call(
        kernel,
        out_shape=jax.ShapeDtypeStruct((B, T), f32),
        grid=(pl.cdiv(B, bb),),
        in_specs=[pl.BlockSpec((bb, H), lambda i: (i, 0)),
                  _const_spec(W_cat.shape),
                  _const_spec(b_cat.shape)],
        out_specs=pl.BlockSpec((bb, T), lambda i: (i, 0)),
        compiler_params=pltpu.CompilerParams(dimension_semantics=("parallel",)),
    )(x_in, W_cat, b_cat)


# ---------------------------------------------------------------------------
# Plain-JAX reference (straight transcription of MLMMOE.forward, eval mode)
# ---------------------------------------------------------------------------
def reference_forward(hidden, params, *, n_expert, mmoe_hidden_dim, num_task, hidden_dim):
    E, T = n_expert, num_task
    eps = 1e-5
    experts_out = jnp.einsum('ij,jkl->ikl', hidden, params['experts']) + params['experts_bias']
    level_out = []
    for e in range(E):
        g = jax.nn.softmax(params['level_gates'][:, e:e + 1], axis=0)          # (E, 1)
        level_out.append(jnp.einsum('abc,cd->abd', experts_out, g))            # (B, M, 1)
    level_out = jnp.concatenate(level_out, axis=-1)                            # (B, M, E)
    preds = []
    for t in range(T):
        gate_out = jax.nn.softmax(hidden @ params['gates'][t] + params['gates_bias'][t], axis=-1)
        x = jnp.sum(level_out * gate_out[:, None, :], axis=2)                  # (B, M)
        for j in range(len(hidden_dim)):
            lw, lb = params['towers'][t]['linear'][j]
            gamma, beta, mean, var = params['towers'][t]['bn'][j]
            x = x @ lw.T + lb
            x = (x - mean) / jnp.sqrt(var + eps) * gamma + beta                # eval BatchNorm1d
            # Dropout: inference -> identity
        lw, lb = params['towers'][t]['linear'][-1]
        x = x @ lw.T + lb
        preds.append(1.0 / (1.0 + jnp.exp(-x)))                                # Sigmoid
    return jnp.concatenate(preds, axis=-1)


if __name__ == "__main__":
    batch = 128
    num_sparse, num_dense = 4, 4
    vocab_sizes = [13, 29, 7, 19]
    embedding_dim = 16
    n_expert, num_task = 3, 2
    mmoe_hidden_dim = 32
    hidden_dim = [32, 16]
    H = num_sparse * embedding_dim + num_dense

    keys = iter(jax.random.split(jax.random.PRNGKey(0), 64))

    def nrm(shape, scale=1.0):
        return scale * jax.random.normal(next(keys), shape, jnp.float32)

    # ---- EmbeddingLayer + get_linear_input equivalent ----
    # TODO(synk): the data-dependent embedding-table gather is kept as XLA glue in the wrapper;
    # only the dense math after it is implemented as a Pallas kernel.
    tables = [nrm((v + 1, embedding_dim), 0.5) for v in vocab_sizes]
    sparse_ids = jnp.stack(
        [jax.random.randint(next(keys), (batch,), 0, v + 1) for v in vocab_sizes], axis=1)
    dense_fea = nrm((batch, num_dense))
    emb = jnp.concatenate([tables[f][sparse_ids[:, f]] for f in range(num_sparse)], axis=-1)
    hidden = jnp.concatenate([emb, dense_fea], axis=-1)            # (batch, H)

    # ---- parameters in their torch layouts ----
    layer_dims = [mmoe_hidden_dim] + hidden_dim
    params = {
        'experts': nrm((H, mmoe_hidden_dim, n_expert), 0.1),
        'experts_bias': nrm((mmoe_hidden_dim, n_expert), 0.1),
        'level_gates': jax.random.uniform(next(keys), (n_expert, n_expert), jnp.float32),
        'gates': [nrm((H, n_expert), 0.1) for _ in range(num_task)],
        'gates_bias': [nrm((n_expert,), 0.1) for _ in range(num_task)],
        'towers': [],
    }
    for t in range(num_task):
        lin, bn = [], []
        for j in range(len(hidden_dim)):
            fan_in, fan_out = layer_dims[j], layer_dims[j + 1]
            lin.append((nrm((fan_out, fan_in), (2.0 / (fan_in + fan_out)) ** 0.5),
                        nrm((fan_out,), 0.05)))
            bn.append((1.0 + nrm((fan_out,), 0.1),                 # gamma
                       nrm((fan_out,), 0.1),                       # beta
                       nrm((fan_out,), 0.1),                       # running_mean
                       1.0 + 0.1 * jnp.abs(nrm((fan_out,)))))      # running_var
        lin.append((nrm((1, hidden_dim[-1]), 0.3), nrm((1,), 0.05)))  # task_last_layer
        params['towers'].append({'linear': lin, 'bn': bn})

    out = mlmmoe_forward(hidden, params, n_expert=n_expert, mmoe_hidden_dim=mmoe_hidden_dim,
                         num_task=num_task, hidden_dim=hidden_dim)
    out = jax.block_until_ready(out)

    ref = reference_forward(hidden, params, n_expert=n_expert, mmoe_hidden_dim=mmoe_hidden_dim,
                            num_task=num_task, hidden_dim=hidden_dim)
    # Tolerance dominated by the bf16 storage of `hidden` on the HBM path (compute is f32);
    # the algebraic tower/level-gate fold itself is exact up to f32 re-association.
    np.testing.assert_allclose(np.asarray(out), np.asarray(ref), rtol=2e-2, atol=2e-2)
    print("KERNEL_OK")
</pallas_src>

<mosaic_0001>
module attributes {stable_mosaic.version = 11 : i64} {
  func.func @_mlmmoe_kernel(%arg0: i32, %arg1: memref<64x68xbf16, #tpu.memory_space<vmem>>, %arg2: memref<68x128xf32, #tpu.memory_space<vmem>>, %arg3: memref<1x128xf32, #tpu.memory_space<vmem>>, %arg4: memref<64x2xf32, #tpu.memory_space<vmem>>) attributes {dimension_semantics = [#tpu.dimension_semantics<parallel>], iteration_bounds = array<i64: 2>, scalar_prefetch = 0 : i64, scratch_operands = 0 : i64, tpu.core_type = #tpu.core_type<tc>, window_params = [{transform_indices = @transform_0, window_bounds = array<i64: 64, 68>}, {pipeline_mode = #tpu.pipeline_mode<synchronous>, transform_indices = @transform_1, window_bounds = array<i64: 68, 128>}, {pipeline_mode = #tpu.pipeline_mode<synchronous>, transform_indices = @transform_2, window_bounds = array<i64: 1, 128>}, {transform_indices = @transform_3, window_bounds = array<i64: 64, 2>}]} {
    %c0 = arith.constant 0 : index
    %c0_0 = arith.constant 0 : index
    %0 = vector.load %arg1[%c0, %c0_0] : memref<64x68xbf16, #tpu.memory_space<vmem>>, vector<64x68xbf16>
    %1 = arith.extf %0 : vector<64x68xbf16> to vector<64x68xf32>
    %c0_1 = arith.constant 0 : index
    %c0_2 = arith.constant 0 : index
    %2 = vector.load %arg2[%c0_1, %c0_2] : memref<68x128xf32, #tpu.memory_space<vmem>>, vector<68x128xf32>
    %cst = arith.constant dense<0.000000e+00> : vector<64x128xf32>
    %3 = tpu.matmul %1, %2, %cst {dimension_numbers = #tpu.dot_dimension_numbers<[1], [0], [0], [1], [0, 0, 1, 1], [], []>} : vector<64x68xf32>, vector<68x128xf32>, vector<64x128xf32> -> vector<64x128xf32>
    %c0_3 = arith.constant 0 : index
    %c0_4 = arith.constant 0 : index
    %4 = vector.load %arg3[%c0_3, %c0_4] : memref<1x128xf32, #tpu.memory_space<vmem>>, vector<1x128xf32>
    %5 = vector.broadcast %4 : vector<1x128xf32> to vector<64x128xf32>
    %6 = arith.addf %3, %5 : vector<64x128xf32>
    %7 = vector.extract_strided_slice %6 {offsets = [0, 0], sizes = [64, 3], strides = [1, 1]} : vector<64x128xf32> to vector<64x3xf32>
    %cst_5 = arith.constant dense<0xFF800000> : vector<64xf32>
    %8 = vector.multi_reduction <maximumf>, %7, %cst_5 [1] : vector<64x3xf32> to vector<64xf32>
    %9 = vector.shape_cast %8 : vector<64xf32> to vector<64x1xf32>
    %10 = vector.broadcast %9 : vector<64x1xf32> to vector<64x3xf32>
    %11 = arith.subf %7, %10 : vector<64x3xf32>
    %12 = math.exp %11 : vector<64x3xf32>
    %cst_6 = arith.constant dense<0.000000e+00> : vector<64xf32>
    %13 = vector.multi_reduction <add>, %12, %cst_6 [1] : vector<64x3xf32> to vector<64xf32>
    %14 = vector.shape_cast %13 : vector<64xf32> to vector<64x1xf32>
    %15 = tpu.reciprocal %14 {approx = true} : vector<64x1xf32> -> vector<64x1xf32>
    %16 = vector.broadcast %15 : vector<64x1xf32> to vector<64x3xf32>
    %17 = arith.mulf %12, %16 : vector<64x3xf32>
    %18 = vector.extract_strided_slice %6 {offsets = [0, 6], sizes = [64, 3], strides = [1, 1]} : vector<64x128xf32> to vector<64x3xf32>
    %19 = arith.mulf %17, %18 : vector<64x3xf32>
    %cst_7 = arith.constant dense<0.000000e+00> : vector<64xf32>
    %20 = vector.multi_reduction <add>, %19, %cst_7 [1] : vector<64x3xf32> to vector<64xf32>
    %21 = vector.shape_cast %20 : vector<64xf32> to vector<64x1xf32>
    %cst_8 = arith.constant 0.000000e+00 : f32
    %22 = vector.broadcast %cst_8 : f32 to vector<64x1xf32>
    %23 = arith.subf %22, %21 : vector<64x1xf32>
    %24 = math.exp %23 : vector<64x1xf32>
    %cst_9 = arith.constant 1.000000e+00 : f32
    %25 = vector.broadcast %cst_9 : f32 to vector<64x1xf32>
    %26 = arith.addf %25, %24 : vector<64x1xf32>
    %27 = tpu.reciprocal %26 {approx = true} : vector<64x1xf32> -> vector<64x1xf32>
    %28 = vector.extract_strided_slice %6 {offsets = [0, 3], sizes = [64, 3], strides = [1, 1]} : vector<64x128xf32> to vector<64x3xf32>
    %cst_10 = arith.constant dense<0xFF800000> : vector<64xf32>
    %29 = vector.multi_reduction <maximumf>, %28, %cst_10 [1] : vector<64x3xf32> to vector<64xf32>
    %30 = vector.shape_cast %29 : vector<64xf32> to vector<64x1xf32>
    %31 = vector.broadcast %30 : vector<64x1xf32> to vector<64x3xf32>
    %32 = arith.subf %28, %31 : vector<64x3xf32>
    %33 = math.exp %32 : vector<64x3xf32>
    %cst_11 = arith.constant dense<0.000000e+00> : vector<64xf32>
    %34 = vector.multi_reduction <add>, %33, %cst_11 [1] : vector<64x3xf32> to vector<64xf32>
    %35 = vector.shape_cast %34 : vector<64xf32> to vector<64x1xf32>
    %36 = tpu.reciprocal %35 {approx = true} : vector<64x1xf32> -> vector<64x1xf32>
    %37 = vector.broadcast %36 : vector<64x1xf32> to vector<64x3xf32>
    %38 = arith.mulf %33, %37 : vector<64x3xf32>
    %39 = vector.extract_strided_slice %6 {offsets = [0, 9], sizes = [64, 3], strides = [1, 1]} : vector<64x128xf32> to vector<64x3xf32>
    %40 = arith.mulf %38, %39 : vector<64x3xf32>
    %cst_12 = arith.constant dense<0.000000e+00> : vector<64xf32>
    %41 = vector.multi_reduction <add>, %40, %cst_12 [1] : vector<64x3xf32> to vector<64xf32>
    %42 = vector.shape_cast %41 : vector<64xf32> to vector<64x1xf32>
    %cst_13 = arith.constant 0.000000e+00 : f32
    %43 = vector.broadcast %cst_13 : f32 to vector<64x1xf32>
    %44 = arith.subf %43, %42 : vector<64x1xf32>
    %45 = math.exp %44 : vector<64x1xf32>
    %cst_14 = arith.constant 1.000000e+00 : f32
    %46 = vector.broadcast %cst_14 : f32 to vector<64x1xf32>
    %47 = arith.addf %46, %45 : vector<64x1xf32>
    %48 = tpu.reciprocal %47 {approx = true} : vector<64x1xf32> -> vector<64x1xf32>
    %49 = tpu.concatenate %27, %48 in 1 : vector<64x1xf32>, vector<64x1xf32> -> vector<64x2xf32>
    %c0_15 = arith.constant 0 : index
    %c0_16 = arith.constant 0 : index
    %50 = vector.load %arg4[%c0_15, %c0_16] : memref<64x2xf32, #tpu.memory_space<vmem>>, vector<64x2xf32>
    tpu.vector_store %arg4[%c0_15, %c0_16], %49 {strides = array<i32>} : memref<64x2xf32, #tpu.memory_space<vmem>>, vector<64x2xf32>,
    return
  }
  func.func @transform_0(%arg0: i32) -> (i32, i32) {
    %c0_i32 = arith.constant 0 : i32
    %c0_i32_0 = arith.constant 0 : i32
    return %arg0, %c0_i32 : i32, i32
  }
  func.func @transform_1(%arg0: i32) -> (i32, i32) {
    %c0_i32 = arith.constant 0 : i32
    %c0_i32_0 = arith.constant 0 : i32
    %c0_i32_1 = arith.constant 0 : i32
    return %c0_i32, %c0_i32_0 : i32, i32
  }
  func.func @transform_2(%arg0: i32) -> (i32, i32) {
    %c0_i32 = arith.constant 0 : i32
    %c0_i32_0 = arith.constant 0 : i32
    %c0_i32_1 = arith.constant 0 : i32
    return %c0_i32, %c0_i32_0 : i32, i32
  }
  func.func @transform_3(%arg0: i32) -> (i32, i32) {
    %c0_i32 = arith.constant 0 : i32
    %c0_i32_0 = arith.constant 0 : i32
    return %arg0, %c0_i32 : i32, i32
  }
}

</mosaic_0001>

<llo_original>
// kernel: tpu_custom_call.1
$region0: #{tpu_custom_call.1}
  #allocation0 [shape = 'u32[]', space=smem, size = 0x4, offset = 0x4, fixed_abs, tag = 'smem constant byte address 0x4 - core index']
  #allocation1 [shape = 'u32[144,128]{1,0:T(1,128)}', space=vmem, size = 0x12000, scoped, tag = 'internal scratch']
  %s0 = inlined_call_operand.vmem [shape: bf16[128,68], index: 0, kind: input, shape index: {}]
  %s1 = inlined_call_operand.vmem [shape: f32[68,128], index: 1, kind: input, shape index: {}]
  %s2 = inlined_call_operand.vmem [shape: f32[1,128], index: 2, kind: input, shape index: {}]
  %s3 = inlined_call_operand.vmem [shape: f32[128,2], index: 3, kind: output, shape index: {}]
  %s4 = sld [smem:[#allocation0]]
  $region45: #{tpu_custom_call.1} parent=0
    _
  %s6 = ssub.s32 1, %s4
  %s7 = scalar_select 0, %s6, %s4
  loop: start=0, step=1, limit=4
  $region2: #{tpu_custom_call.1} parent=0 // loop_pre_header
    _
  $region3: #{tpu_custom_call.1} parent=0 // loop_header
    %s9 = sphi 0, %s13
    %p10 = scmp.ge.s32.totalorder %s9, 4
    %s19 = sphi 0, %s21
    %s22 = sphi 0, %s19
    %s23 = sphi 0, %s22
    %s39 = sphi 0, %s23
    %s43 = sphi 0, %s43
    %s45 = sphi 0, %s43
    %s46 = sphi 0, %s45
    %s60 = sphi 0, %s46
    %s64 = sphi 0, %s64
    %s66 = sphi 0, %s64
    %s67 = sphi 0, %s66
    %s81 = sphi 0, %s67
    %s87 = sphi 0, %s89
    %s90 = sphi 0, %s87
    %s91 = sphi 0, %s90
    %s107 = sphi 0, %s91
  $region4: #{tpu_custom_call.1} parent=0 // loop_header_branch
    %12 = sbr.rel (%p10) target = $region8
  $region5: #{tpu_custom_call.1} parent=0 // loop_body
    %s14 = ssub.s32 %s9, 1
    %s15 = ssub.s32 %s9, 2
    %s16 = sadd.s32 %s9, 1
    %s17 = ssub.s32 %s9, %s16
    %p18 = scmp.eq.s32.totalorder %s17, 0
    %s20 = sadd.s32 %s19, 1
    %s21 = scalar_select %p18, %s19, %s20
    %p24 = pneg %p18
    %p25 = scmp.eq.s32.totalorder %s9, 1
    %p26 = por %p24, %p25
    %p27 = scmp.ne.s32.totalorder %s19, %s22
    %p28 = scmp.eq.s32.totalorder %s9, 0
    %p29 = por %p27, %p28
    %p30 = scmp.ne.s32.totalorder %s19, %s22
    %p31 = scmp.eq.s32.totalorder %s14, 1
    %p32 = por %p30, %p31
    %p33 = scmp.ne.s32.totalorder %s22, %s23
    %p34 = scmp.eq.s32.totalorder %s14, 0
    %p35 = por %p33, %p34
    %p36 = scmp.ne.s32.totalorder %s22, %s23
    %p37 = scmp.eq.s32.totalorder %s15, 1
    %p38 = por %p36, %p37
    %p40 = scmp.ne.s32.totalorder %s23, %s39
    %p41 = scmp.eq.s32.totalorder %s15, 0
    %p42 = por %p40, %p41
    %s44 = sadd.s32 %s43, 1
    %p47 = scmp.eq.s32.totalorder %s9, 1
    %p48 = scmp.ne.s32.totalorder %s43, %s45
    %p49 = scmp.eq.s32.totalorder %s9, 0
    %p50 = por %p48, %p49
    %p51 = scmp.ne.s32.totalorder %s43, %s45
    %p52 = scmp.eq.s32.totalorder %s14, 1
    %p53 = por %p51, %p52
    %p54 = scmp.ne.s32.totalorder %s45, %s46
    %p55 = scmp.eq.s32.totalorder %s14, 0
    %p56 = por %p54, %p55
    %p57 = scmp.ne.s32.totalorder %s45, %s46
    %p58 = scmp.eq.s32.totalorder %s15, 1
    %p59 = por %p57, %p58
    %p61 = scmp.ne.s32.totalorder %s46, %s60
    %p62 = scmp.eq.s32.totalorder %s15, 0
    %p63 = por %p61, %p62
    %s65 = sadd.s32 %s64, 1
    %p68 = scmp.eq.s32.totalorder %s9, 1
    %p69 = scmp.ne.s32.totalorder %s64, %s66
    %p70 = scmp.eq.s32.totalorder %s9, 0
    %p71 = por %p69, %p70
    %p72 = scmp.ne.s32.totalorder %s64, %s66
    %p73 = scmp.eq.s32.totalorder %s14, 1
    %p74 = por %p72, %p73
    %p75 = scmp.ne.s32.totalorder %s66, %s67
    %p76 = scmp.eq.s32.totalorder %s14, 0
    %p77 = por %p75, %p76
    %p78 = scmp.ne.s32.totalorder %s66, %s67
    %p79 = scmp.eq.s32.totalorder %s15, 1
    %p80 = por %p78, %p79
    %p82 = scmp.ne.s32.totalorder %s67, %s81
    %p83 = scmp.eq.s32.totalorder %s15, 0
    %p84 = por %p82, %p83
    %s85 = ssub.s32 %s9, %s16
    %p86 = scmp.eq.s32.totalorder %s85, 0
    %s88 = sadd.s32 %s87, 1
    %s89 = scalar_select %p86, %s87, %s88
    %p92 = pneg %p86
    %p93 = scmp.eq.s32.totalorder %s9, 1
    %p94 = por %p92, %p93
    %p95 = scmp.ne.s32.totalorder %s87, %s90
    %p96 = scmp.eq.s32.totalorder %s9, 0
    %p97 = por %p95, %p96
    %p98 = scmp.ne.s32.totalorder %s87, %s90
    %p99 = scmp.eq.s32.totalorder %s14, 1
    %p100 = por %p98, %p99
    %p101 = scmp.ne.s32.totalorder %s90, %s91
    %p102 = scmp.eq.s32.totalorder %s14, 0
    %p103 = por %p101, %p102
    %p104 = scmp.ne.s32.totalorder %s90, %s91
    %p105 = scmp.eq.s32.totalorder %s15, 1
    %p106 = por %p104, %p105
    %p108 = scmp.ne.s32.totalorder %s91, %s107
    %p109 = scmp.eq.s32.totalorder %s15, 0
    %p110 = por %p108, %p109
    %p111 = scmp.le.s32.totalorder 1, %s9
    %p112 = scmp.lt.s32.totalorder %s9, 3
    %p113 = pnand %p111, %p112
    %p114 = pneg %p113
    // Predicated region
    $region9: #{tpu_custom_call.1} parent=5 // pred_check
      _
    $region10: #{tpu_custom_call.1} parent=5 // pred_check_branch
      %116 = sbr.rel (%p113) target = $region12
    $region11: #{tpu_custom_call.1} parent=5 // pred_region
      %s117 = ssub.s32 %s9, 1
      // Predicated region
      $region13: #{tpu_custom_call.1} parent=11 // pred_check
        %p118 = pneg %p56
      $region14: #{tpu_custom_call.1} parent=11 // pred_check_branch
        %120 = sbr.rel (%p118) target = $region16
      $region15: #{tpu_custom_call.1} parent=11 // pred_region
        _
      $region16: #{tpu_custom_call.1} parent=11 // pred_fallthru
        _
      // Predicated region
      $region17: #{tpu_custom_call.1} parent=11 // pred_check
        %p121 = pneg %p77
      $region18: #{tpu_custom_call.1} parent=11 // pred_check_branch
        %123 = sbr.rel (%p121) target = $region20
      $region19: #{tpu_custom_call.1} parent=11 // pred_region
        _
      $region20: #{tpu_custom_call.1} parent=11 // pred_fallthru
        _
    $region12: #{tpu_custom_call.1} parent=5 // pred_fallthru
      _
    %p124 = scmp.lt.s32.totalorder %s9, 2
    // Predicated region
    $region21: #{tpu_custom_call.1} parent=5 // pred_check
      %p125 = pneg %p124
    $region22: #{tpu_custom_call.1} parent=5 // pred_check_branch
      %127 = sbr.rel (%p125) target = $region24
    $region23: #{tpu_custom_call.1} parent=5 // pred_region
      // Predicated region
      $region25: #{tpu_custom_call.1} parent=23 // pred_check
        %p128 = pneg %p29
      $region26: #{tpu_custom_call.1} parent=23 // pred_check_branch
        %130 = sbr.rel (%p128) target = $region28
      $region27: #{tpu_custom_call.1} parent=23 // pred_region
        %s131 = smul.u32 8, %s9
        %p132 = scmp.lt.s32.totalorder %s131, 15
        %s133 = scalar_select %p132, %s131, 15
        %s134 = smul.addr %s133, 4
        %s135 = scalar_lea.vmem %s0, %s134
        %s136 = smul.u32 8, %s9
      $region28: #{tpu_custom_call.1} parent=23 // pred_fallthru
        _
    $region24: #{tpu_custom_call.1} parent=5 // pred_fallthru
      _
    %p137 = scmp.le.s32.totalorder 1, %s9
    %p138 = scmp.lt.s32.totalorder %s9, 3
    %p139 = pnand %p137, %p138
    %p140 = pneg %p139
    // Predicated region
    $region29: #{tpu_custom_call.1} parent=5 // pred_check
      _
    $region30: #{tpu_custom_call.1} parent=5 // pred_check_branch
      %142 = sbr.rel (%p139) target = $region32
    $region31: #{tpu_custom_call.1} parent=5 // pred_region
      %s143 = ssub.s32 %s9, 1
      %s144 = smul.u32 8, %s14
      %p145 = scmp.lt.s32.totalorder %s144, 15
      %s146 = scalar_select %p145, %s144, 15
      %s147 = smul.addr %s146, 4
      %s148 = scalar_lea.vmem %s0, %s147
      %p149 = pneg %p35
      %p150 = pneg %p32
      %p151 = pneg %p56
      %p152 = pneg %p53
      %p153 = pneg %p77
      %p154 = pneg %p74
      %p155 = pneg %p103
      %p156 = pneg %p100
      %s157 = smul.u32 8, %s14
      %p158 = scmp.lt.s32.totalorder %s157, 15
      %s159 = scalar_select %p158, %s157, 15
      %s160 = smul.addr %s159, 8
      %s161 = scalar_lea.vmem %s3, %s160
      %s162 = smul.u32 8, %s14
      %p163 = scmp.lt.s32.totalorder %s162, 15
      %s164 = scalar_select %p163, %s162, 15
      %s165 = smul.addr %s164, 4
      %s166 = scalar_lea.vmem %s0, %s165
      %s167 = smul.u32 8, %s14
      %s168 = smul.u32 8, %s14
      %p169 = scmp.lt.s32.totalorder %s168, 15
      %s170 = scalar_select %p169, %s168, 15
      %s171 = smul.addr %s170, 8
      %s172 = scalar_lea.vmem %s3, %s171
      %s173 = smul.u32 8, %s14
      %v174 = vld [vmem:[%s166] sm:$0xf]
      %v175 = vld [vmem:[%s166 + $0x4] sm:$0xf]
      %v176 = vld [vmem:[%s166 + $0x8] sm:$0xf]
      %v177 = vld [vmem:[%s166 + $0xc] sm:$0xf]
      %v178 = vld [vmem:[%s166 + $0x10] sm:$0xf]
      %v179 = vld [vmem:[%s166 + $0x14] sm:$0xf]
      %v180 = vld [vmem:[%s166 + $0x18] sm:$0xf]
      %v181 = vld [vmem:[%s166 + $0x1c] sm:$0xf]
      %v182 = vunpack.c.l.bf16 %v174
      %v183 = vunpack.c.l.bf16 %v175
      %v184 = vunpack.c.l.bf16 %v176
      %v185 = vunpack.c.l.bf16 %v177
      %v186 = vunpack.c.l.bf16 %v178
      %v187 = vunpack.c.l.bf16 %v179
      %v188 = vunpack.c.l.bf16 %v180
      %v189 = vunpack.c.l.bf16 %v181
      %v190 = vld [vmem:[%s1] sm:$0xff]
      %v191 = vld [vmem:[%s1 + $0x8] sm:$0xff]
      %v192 = vld [vmem:[%s1 + $0x10] sm:$0xff]
      %v193 = vld [vmem:[%s1 + $0x18] sm:$0xff]
      %v194 = vld [vmem:[%s1 + $0x20] sm:$0xff]
      %v195 = vld [vmem:[%s1 + $0x28] sm:$0xff]
      %v196 = vld [vmem:[%s1 + $0x30] sm:$0xff]
      %v197 = vld [vmem:[%s1 + $0x38] sm:$0xff]
      %v198 = vld [vmem:[%s1 + $0x40] sm:$0xf]
      %v199 = vld [vmem:[%s2] sm:$0x1]
      %v201 = vlaneseq
      %v202 = vshrl.u32 %v201, 7
      %v203 = vsub.s32 0, %v202
      %v204 = vrot.slane %v199, %v203
      %vm206 = vcmask 556032
      %v208 = vsel %vm206, %v182, 0
      %v211 = vsel %vm206, %v183, 0
      %v214 = vsel %vm206, %v184, 0
      %v217 = vsel %vm206, %v185, 0
      %v220 = vsel %vm206, %v186, 0
      %v223 = vsel %vm206, %v187, 0
      %v226 = vsel %vm206, %v188, 0
      %v229 = vsel %vm206, %v189, 0
      %vm231 = vcmask 1043456
      %v233 = vsel %vm231, %v198, 0
      %235 = vmatprep.subr.mxu0 0.0
      %236 = vmatpush1.msra.mxu0 %v190
      %237 = vmatprep.subr.mxu0 0.0
      %238 = vmatpush1.msra.mxu0 %v191
      %239 = vmatprep.subr.mxu0 0.0
      %240 = vmatpush1.msra.mxu0 %v192
      %241 = vmatprep.subr.mxu0 0.0
      %242 = vmatpush1.msra.mxu0 %v193
      %243 = vmatprep.subr.mxu0 0.0
      %244 = vmatpush1.msra.mxu0 %v194
      %245 = vmatprep.subr.mxu0 0.0
      %246 = vmatpush1.msra.mxu0 %v195
      %247 = vmatprep.subr.mxu0 0.0
      %248 = vmatpush1.msra.mxu0 %v196
      %249 = vmatprep.subr.mxu0 0.0
      %250 = vmatpush1.msra.mxu0 %v197
      %251 = vmatprep.subr.mxu0 0.0
      %252 = vmatpush1.msra.mxu0 %v233
      %253 = vmatprep.subr.mxu0 0.0
      %254 = vmatpush1.msra.mxu0 0.0
      %255 = vmatprep.subr.mxu0 0.0
      %256 = vmatpush1.msra.mxu0 0.0
      %257 = vmatprep.subr.mxu0 0.0
      %258 = vmatpush1.msra.mxu0 0.0
      %259 = vmatprep.subr.mxu0 0.0
      %260 = vmatpush1.msra.mxu0 0.0
      %261 = vmatprep.subr.mxu0 0.0
      %262 = vmatpush1.msra.mxu0 0.0
      %263 = vmatprep.subr.mxu0 0.0
      %264 = vmatpush1.msra.mxu0 0.0
      %265 = vmatprep.subr.mxu0 0.0
      %266 = vmatpush1.msra.mxu0 0.0
      %267 = vmatprep.subr.mxu0 0.0
      %268 = vmatpush1.msra.mxu0 0.0
      %269 = vmatprep.subr.mxu0 0.0
      %270 = vmatpush1.msra.mxu0 0.0
      %271 = vmatprep.subr.mxu0 0.0
      %272 = vmatpush1.msra.mxu0 0.0
      %273 = vmatprep.subr.mxu0 0.0
      %274 = vmatpush1.msra.mxu0 0.0
      %275 = vmatprep.subr.mxu0 0.0
      %276 = vmatpush1.msra.mxu0 0.0
      %277 = vmatprep.subr.mxu0 0.0
      %278 = vmatpush1.msra.mxu0 0.0
      %279 = vmatprep.subr.mxu0 0.0
      %280 = vmatpush1.msra.mxu0 0.0
      %281 = vmatprep.subr.mxu0 0.0
      %282 = vmatpush1.msra.mxu0 0.0
      %283 = vmatprep.subr.mxu0 0.0
      %284 = vmatpush1.msra.mxu0 0.0
      %285 = vmatprep.subr.mxu0 0.0
      %286 = vmatpush1.msra.mxu0 0.0
      %287 = vmatprep.subr.mxu0 0.0
      %288 = vmatpush1.msra.mxu0 0.0
      %289 = vmatprep.subr.mxu0 0.0
      %290 = vmatpush1.msra.mxu0 0.0
      %291 = vmatprep.subr.mxu0 0.0
      %292 = vmatpush1.msra.mxu0 0.0
      %293 = vmatprep.subr.mxu0 0.0
      %294 = vmatpush1.msra.mxu0 0.0
      %295 = vmatprep.subr.mxu0 0.0
      %296 = vmatpush1.msra.mxu0 0.0
      %297 = vmatprep.subr.mxu0 0.0
      %298 = vmatpush1.msra.mxu0 0.0
      %299 = vmatprep.mubr.f32.mxu0 0.0
      %300 = vmatmul.mubr.f32.gmra.mrb[0].mxu0 %v208
      %v301 = vpop.f32.mrb[0].mxu0
      %v302 = vadd.f32 %v204, %v301
      %v303 = vpop.f32.mrb[0].mxu0
      %304 = vmatprep.mubr.f32.mxu0 0.0
      %305 = vmatmul.mubr.f32.gmra.mrb[0].mxu0 %v211
      %v306 = vpop.f32.mrb[0].mxu0
      %v307 = vadd.f32 %v204, %v306
      %v308 = vpop.f32.mrb[0].mxu0
      %309 = vmatprep.mubr.f32.mxu0 0.0
      %310 = vmatmul.mubr.f32.gmra.mrb[0].mxu0 %v214
      %v311 = vpop.f32.mrb[0].mxu0
      %v312 = vadd.f32 %v204, %v311
      %v313 = vpop.f32.mrb[0].mxu0
      %314 = vmatprep.mubr.f32.mxu0 0.0
      %315 = vmatmul.mubr.f32.gmra.mrb[0].mxu0 %v217
      %v316 = vpop.f32.mrb[0].mxu0
      %v317 = vadd.f32 %v204, %v316
      %v318 = vpop.f32.mrb[0].mxu0
      %319 = vmatprep.mubr.f32.mxu0 0.0
      %320 = vmatmul.mubr.f32.gmra.mrb[0].mxu0 %v220
      %v321 = vpop.f32.mrb[0].mxu0
      %v322 = vadd.f32 %v204, %v321
      %v323 = vpop.f32.mrb[0].mxu0
      %324 = vmatprep.mubr.f32.mxu0 0.0
      %325 = vmatmul.mubr.f32.gmra.mrb[0].mxu0 %v223
      %v326 = vpop.f32.mrb[0].mxu0
      %v327 = vadd.f32 %v204, %v326
      %v328 = vpop.f32.mrb[0].mxu0
      %329 = vmatprep.mubr.f32.mxu0 0.0
      %330 = vmatmul.mubr.f32.gmra.mrb[0].mxu0 %v226
      %v331 = vpop.f32.mrb[0].mxu0
      %v332 = vadd.f32 %v204, %v331
      %v333 = vpop.f32.mrb[0].mxu0
      %334 = vmatprep.mubr.f32.mxu0 0.0
      %335 = vmatmul.mubr.f32.gmra.mrb[0].mxu0 %v229
      %v336 = vpop.f32.mrb[0].mxu0
      %v337 = vadd.f32 %v204, %v336
      %v338 = vpop.f32.mrb[0].mxu0
      %339 = vdwg.mxu0
      %vm340 = vcmask 23552
      %v341 = vsel %vm340, %v302, -inf
      %342 = vmax.xlane.f32.xlu0 %v341
      %v343 = vpop.xlane.xlu0 %342
      %v344 = vsel %vm340, %v307, -inf
      %345 = vmax.xlane.f32.xlu0 %v344
      %v346 = vpop.xlane.xlu0 %345
      %v347 = vsel %vm340, %v312, -inf
      %348 = vmax.xlane.f32.xlu0 %v347
      %v349 = vpop.xlane.xlu0 %348
      %v350 = vsel %vm340, %v317, -inf
      %351 = vmax.xlane.f32.xlu0 %v350
      %v352 = vpop.xlane.xlu0 %351
      %v353 = vsel %vm340, %v322, -inf
      %354 = vmax.xlane.f32.xlu0 %v353
      %v355 = vpop.xlane.xlu0 %354
      %v356 = vsel %vm340, %v327, -inf
      %357 = vmax.xlane.f32.xlu0 %v356
      %v358 = vpop.xlane.xlu0 %357
      %v359 = vsel %vm340, %v332, -inf
      %360 = vmax.xlane.f32.xlu0 %v359
      %v361 = vpop.xlane.xlu0 %360
      %v362 = vsel %vm340, %v337, -inf
      %363 = vmax.xlane.f32.xlu0 %v362
      %v364 = vpop.xlane.xlu0 %363
      %v365 = vsub.f32 %v302, %v343
      %v366 = vsub.f32 %v307, %v346
      %v367 = vsub.f32 %v312, %v349
      %v368 = vsub.f32 %v317, %v352
      %v369 = vsub.f32 %v322, %v355
      %v370 = vsub.f32 %v327, %v358
      %v371 = vsub.f32 %v332, %v361
      %v372 = vsub.f32 %v337, %v364
      %v373 = vmul.f32 %v365, 1.442695
      %v374 = vpow.pop %v373
      %v375 = vmul.f32 %v366, 1.442695
      %v376 = vpow.pop %v375
      %v377 = vmul.f32 %v367, 1.442695
      %v378 = vpow.pop %v377
      %v379 = vmul.f32 %v368, 1.442695
      %v380 = vpow.pop %v379
      %v381 = vmul.f32 %v369, 1.442695
      %v382 = vpow.pop %v381
      %v383 = vmul.f32 %v370, 1.442695
      %v384 = vpow.pop %v383
      %v385 = vmul.f32 %v371, 1.442695
      %v386 = vpow.pop %v385
      %v387 = vmul.f32 %v372, 1.442695
      %v388 = vpow.pop %v387
      %v389 = vsel %vm340, %v374, 0.0
      %390 = vadd.xlane.f32.xlu0 %v389
      %v391 = vpop.xlane.xlu0 %390
      %v392 = vsel %vm340, %v376, 0.0
      %393 = vadd.xlane.f32.xlu0 %v392
      %v394 = vpop.xlane.xlu0 %393
      %v395 = vsel %vm340, %v378, 0.0
      %396 = vadd.xlane.f32.xlu0 %v395
      %v397 = vpop.xlane.xlu0 %396
      %v398 = vsel %vm340, %v380, 0.0
      %399 = vadd.xlane.f32.xlu0 %v398
      %v400 = vpop.xlane.xlu0 %399
      %v401 = vsel %vm340, %v382, 0.0
      %402 = vadd.xlane.f32.xlu0 %v401
      %v403 = vpop.xlane.xlu0 %402
      %v404 = vsel %vm340, %v384, 0.0
      %405 = vadd.xlane.f32.xlu0 %v404
      %v406 = vpop.xlane.xlu0 %405
      %v407 = vsel %vm340, %v386, 0.0
      %408 = vadd.xlane.f32.xlu0 %v407
      %v409 = vpop.xlane.xlu0 %408
      %v410 = vsel %vm340, %v388, 0.0
      %411 = vadd.xlane.f32.xlu0 %v410
      %v412 = vpop.xlane.xlu0 %411
      %v413 = vrcp.pop %v391
      %v414 = vrcp.pop %v394
      %v415 = vrcp.pop %v397
      %v416 = vrcp.pop %v400
      %v417 = vrcp.pop %v403
      %v418 = vrcp.pop %v406
      %v419 = vrcp.pop %v409
      %v420 = vrcp.pop %v412
      %v421 = vmul.f32 %v374, %v413
      %v422 = vmul.f32 %v376, %v414
      %v423 = vmul.f32 %v378, %v415
      %v424 = vmul.f32 %v380, %v416
      %v425 = vmul.f32 %v382, %v417
      %v426 = vmul.f32 %v384, %v418
      %v427 = vmul.f32 %v386, %v419
      %v428 = vmul.f32 %v388, %v420
      %437 = vrot.lane.b32.xlu0 %v302, 122
      %v438 = vpop.permute.xlu0 %437
      %439 = vrot.lane.b32.xlu0 %v307, 122
      %v440 = vpop.permute.xlu0 %439
      %441 = vrot.lane.b32.xlu0 %v312, 122
      %v442 = vpop.permute.xlu0 %441
      %443 = vrot.lane.b32.xlu0 %v317, 122
      %v444 = vpop.permute.xlu0 %443
      %445 = vrot.lane.b32.xlu0 %v322, 122
      %v446 = vpop.permute.xlu0 %445
      %447 = vrot.lane.b32.xlu0 %v327, 122
      %v448 = vpop.permute.xlu0 %447
      %449 = vrot.lane.b32.xlu0 %v332, 122
      %v450 = vpop.permute.xlu0 %449
      %451 = vrot.lane.b32.xlu0 %v337, 122
      %v452 = vpop.permute.xlu0 %451
      %v461 = vmul.f32 %v421, %v438
      %v462 = vmul.f32 %v422, %v440
      %v463 = vmul.f32 %v423, %v442
      %v464 = vmul.f32 %v424, %v444
      %v465 = vmul.f32 %v425, %v446
      %v466 = vmul.f32 %v426, %v448
      %v467 = vmul.f32 %v427, %v450
      %v468 = vmul.f32 %v428, %v452
      %v469 = vsel %vm340, %v461, 0.0
      %470 = vadd.xlane.f32.xlu0 %v469
      %v471 = vpop.xlane.xlu0 %470
      %v472 = vsel %vm340, %v462, 0.0
      %473 = vadd.xlane.f32.xlu0 %v472
      %v474 = vpop.xlane.xlu0 %473
      %v475 = vsel %vm340, %v463, 0.0
      %476 = vadd.xlane.f32.xlu0 %v475
      %v477 = vpop.xlane.xlu0 %476
      %v478 = vsel %vm340, %v464, 0.0
      %479 = vadd.xlane.f32.xlu0 %v478
      %v480 = vpop.xlane.xlu0 %479
      %v481 = vsel %vm340, %v465, 0.0
      %482 = vadd.xlane.f32.xlu0 %v481
      %v483 = vpop.xlane.xlu0 %482
      %v484 = vsel %vm340, %v466, 0.0
      %485 = vadd.xlane.f32.xlu0 %v484
      %v486 = vpop.xlane.xlu0 %485
      %v487 = vsel %vm340, %v467, 0.0
      %488 = vadd.xlane.f32.xlu0 %v487
      %v489 = vpop.xlane.xlu0 %488
      %v490 = vsel %vm340, %v468, 0.0
      %491 = vadd.xlane.f32.xlu0 %v490
      %v492 = vpop.xlane.xlu0 %491
      %v493 = vsub.f32 0.0, %v471
      %v494 = vsub.f32 0.0, %v474
      %v495 = vsub.f32 0.0, %v477
      %v496 = vsub.f32 0.0, %v480
      %v497 = vsub.f32 0.0, %v483
      %v498 = vsub.f32 0.0, %v486
      %v499 = vsub.f32 0.0, %v489
      %v500 = vsub.f32 0.0, %v492
      %v501 = vmul.f32 %v493, 1.442695
      %v502 = vpow.pop %v501
      %v503 = vmul.f32 %v494, 1.442695
      %v504 = vpow.pop %v503
      %v505 = vmul.f32 %v495, 1.442695
      %v506 = vpow.pop %v505
      %v507 = vmul.f32 %v496, 1.442695
      %v508 = vpow.pop %v507
      %v509 = vmul.f32 %v497, 1.442695
      %v510 = vpow.pop %v509
      %v511 = vmul.f32 %v498, 1.442695
      %v512 = vpow.pop %v511
      %v513 = vmul.f32 %v499, 1.442695
      %v514 = vpow.pop %v513
      %v515 = vmul.f32 %v500, 1.442695
      %v516 = vpow.pop %v515
      %v517 = vadd.f32 %v502, 1.0
      %v518 = vadd.f32 %v504, 1.0
      %v519 = vadd.f32 %v506, 1.0
      %v520 = vadd.f32 %v508, 1.0
      %v521 = vadd.f32 %v510, 1.0
      %v522 = vadd.f32 %v512, 1.0
      %v523 = vadd.f32 %v514, 1.0
      %v524 = vadd.f32 %v516, 1.0
      %v525 = vrcp.pop %v517
      %v526 = vrcp.pop %v518
      %v527 = vrcp.pop %v519
      %v528 = vrcp.pop %v520
      %v529 = vrcp.pop %v521
      %v530 = vrcp.pop %v522
      %v531 = vrcp.pop %v523
      %v532 = vrcp.pop %v524
      %vm533 = vcmask 48152
      %v534 = vsel %vm533, %v302, -inf
      %535 = vmax.xlane.f32.xlu0 %v534
      %v536 = vpop.xlane.xlu0 %535
      %v537 = vsel %vm533, %v307, -inf
      %538 = vmax.xlane.f32.xlu0 %v537
      %v539 = vpop.xlane.xlu0 %538
      %v540 = vsel %vm533, %v312, -inf
      %541 = vmax.xlane.f32.xlu0 %v540
      %v542 = vpop.xlane.xlu0 %541
      %v543 = vsel %vm533, %v317, -inf
      %544 = vmax.xlane.f32.xlu0 %v543
      %v545 = vpop.xlane.xlu0 %544
      %v546 = vsel %vm533, %v322, -inf
      %547 = vmax.xlane.f32.xlu0 %v546
      %v548 = vpop.xlane.xlu0 %547
      %v549 = vsel %vm533, %v327, -inf
      %550 = vmax.xlane.f32.xlu0 %v549
      %v551 = vpop.xlane.xlu0 %550
      %v552 = vsel %vm533, %v332, -inf
      %553 = vmax.xlane.f32.xlu0 %v552
      %v554 = vpop.xlane.xlu0 %553
      %v555 = vsel %vm533, %v337, -inf
      %556 = vmax.xlane.f32.xlu0 %v555
      %v557 = vpop.xlane.xlu0 %556
      %v558 = vsub.f32 %v302, %v536
      %v559 = vsub.f32 %v307, %v539
      %v560 = vsub.f32 %v312, %v542
      %v561 = vsub.f32 %v317, %v545
      %v562 = vsub.f32 %v322, %v548
      %v563 = vsub.f32 %v327, %v551
      %v564 = vsub.f32 %v332, %v554
      %v565 = vsub.f32 %v337, %v557
      %v566 = vmul.f32 %v558, 1.442695
      %v567 = vpow.pop %v566
      %v568 = vmul.f32 %v559, 1.442695
      %v569 = vpow.pop %v568
      %v570 = vmul.f32 %v560, 1.442695
      %v571 = vpow.pop %v570
      %v572 = vmul.f32 %v561, 1.442695
      %v573 = vpow.pop %v572
      %v574 = vmul.f32 %v562, 1.442695
      %v575 = vpow.pop %v574
      %v576 = vmul.f32 %v563, 1.442695
      %v577 = vpow.pop %v576
      %v578 = vmul.f32 %v564, 1.442695
      %v579 = vpow.pop %v578
      %v580 = vmul.f32 %v565, 1.442695
      %v581 = vpow.pop %v580
      %590 = vrot.lane.b32.xlu0 %v567, 125
      %v591 = vpop.permute.xlu0 %590
      %592 = vrot.lane.b32.xlu0 %v569, 125
      %v593 = vpop.permute.xlu0 %592
      %594 = vrot.lane.b32.xlu0 %v571, 125
      %v595 = vpop.permute.xlu0 %594
      %596 = vrot.lane.b32.xlu0 %v573, 125
      %v597 = vpop.permute.xlu0 %596
      %598 = vrot.lane.b32.xlu0 %v575, 125
      %v599 = vpop.permute.xlu0 %598
      %600 = vrot.lane.b32.xlu0 %v577, 125
      %v601 = vpop.permute.xlu0 %600
      %602 = vrot.lane.b32.xlu0 %v579, 125
      %v603 = vpop.permute.xlu0 %602
      %604 = vrot.lane.b32.xlu0 %v581, 125
      %v605 = vpop.permute.xlu0 %604
      %v614 = vsel %vm340, %v591, 0.0
      %615 = vadd.xlane.f32.xlu0 %v614
      %v616 = vpop.xlane.xlu0 %615
      %v617 = vsel %vm340, %v593, 0.0
      %618 = vadd.xlane.f32.xlu0 %v617
      %v619 = vpop.xlane.xlu0 %618
      %v620 = vsel %vm340, %v595, 0.0
      %621 = vadd.xlane.f32.xlu0 %v620
      %v622 = vpop.xlane.xlu0 %621
      %v623 = vsel %vm340, %v597, 0.0
      %624 = vadd.xlane.f32.xlu0 %v623
      %v625 = vpop.xlane.xlu0 %624
      %v626 = vsel %vm340, %v599, 0.0
      %627 = vadd.xlane.f32.xlu0 %v626
      %v628 = vpop.xlane.xlu0 %627
      %v629 = vsel %vm340, %v601, 0.0
      %630 = vadd.xlane.f32.xlu0 %v629
      %v631 = vpop.xlane.xlu0 %630
      %v632 = vsel %vm340, %v603, 0.0
      %633 = vadd.xlane.f32.xlu0 %v632
      %v634 = vpop.xlane.xlu0 %633
      %v635 = vsel %vm340, %v605, 0.0
      %636 = vadd.xlane.f32.xlu0 %v635
      %v637 = vpop.xlane.xlu0 %636
      %v638 = vrcp.pop %v616
      %v639 = vrcp.pop %v619
      %v640 = vrcp.pop %v622
      %v641 = vrcp.pop %v625
      %v642 = vrcp.pop %v628
      %v643 = vrcp.pop %v631
      %v644 = vrcp.pop %v634
      %v645 = vrcp.pop %v637
      %v646 = vmul.f32 %v567, %v638
      %v647 = vmul.f32 %v569, %v639
      %v648 = vmul.f32 %v571, %v640
      %v649 = vmul.f32 %v573, %v641
      %v650 = vmul.f32 %v575, %v642
      %v651 = vmul.f32 %v577, %v643
      %v652 = vmul.f32 %v579, %v644
      %v653 = vmul.f32 %v581, %v645
      %v654 = vmul.f32 %v646, %v438
      %v655 = vmul.f32 %v647, %v440
      %v656 = vmul.f32 %v648, %v442
      %v657 = vmul.f32 %v649, %v444
      %v658 = vmul.f32 %v650, %v446
      %v659 = vmul.f32 %v651, %v448
      %v660 = vmul.f32 %v652, %v450
      %v661 = vmul.f32 %v653, %v452
      %670 = vrot.lane.b32.xlu0 %v654, 125
      %v671 = vpop.permute.xlu0 %670
      %672 = vrot.lane.b32.xlu0 %v655, 125
      %v673 = vpop.permute.xlu0 %672
      %674 = vrot.lane.b32.xlu0 %v656, 125
      %v675 = vpop.permute.xlu0 %674
      %676 = vrot.lane.b32.xlu0 %v657, 125
      %v677 = vpop.permute.xlu0 %676
      %678 = vrot.lane.b32.xlu0 %v658, 125
      %v679 = vpop.permute.xlu0 %678
      %680 = vrot.lane.b32.xlu0 %v659, 125
      %v681 = vpop.permute.xlu0 %680
      %682 = vrot.lane.b32.xlu0 %v660, 125
      %v683 = vpop.permute.xlu0 %682
      %684 = vrot.lane.b32.xlu0 %v661, 125
      %v685 = vpop.permute.xlu0 %684
      %v694 = vsel %vm340, %v671, 0.0
      %695 = vadd.xlane.f32.xlu0 %v694
      %v696 = vpop.xlane.xlu0 %695
      %v697 = vsel %vm340, %v673, 0.0
      %698 = vadd.xlane.f32.xlu0 %v697
      %v699 = vpop.xlane.xlu0 %698
      %v700 = vsel %vm340, %v675, 0.0
      %701 = vadd.xlane.f32.xlu0 %v700
      %v702 = vpop.xlane.xlu0 %701
      %v703 = vsel %vm340, %v677, 0.0
      %704 = vadd.xlane.f32.xlu0 %v703
      %v705 = vpop.xlane.xlu0 %704
      %v706 = vsel %vm340, %v679, 0.0
      %707 = vadd.xlane.f32.xlu0 %v706
      %v708 = vpop.xlane.xlu0 %707
      %v709 = vsel %vm340, %v681, 0.0
      %710 = vadd.xlane.f32.xlu0 %v709
      %v711 = vpop.xlane.xlu0 %710
      %v712 = vsel %vm340, %v683, 0.0
      %713 = vadd.xlane.f32.xlu0 %v712
      %v714 = vpop.xlane.xlu0 %713
      %v715 = vsel %vm340, %v685, 0.0
      %716 = vadd.xlane.f32.xlu0 %v715
      %v717 = vpop.xlane.xlu0 %716
      %v718 = vsub.f32 0.0, %v696
      %v719 = vsub.f32 0.0, %v699
      %v720 = vsub.f32 0.0, %v702
      %v721 = vsub.f32 0.0, %v705
      %v722 = vsub.f32 0.0, %v708
      %v723 = vsub.f32 0.0, %v711
      %v724 = vsub.f32 0.0, %v714
      %v725 = vsub.f32 0.0, %v717
      %v726 = vmul.f32 %v718, 1.442695
      %v727 = vpow.pop %v726
      %v728 = vmul.f32 %v719, 1.442695
      %v729 = vpow.pop %v728
      %v730 = vmul.f32 %v720, 1.442695
      %v731 = vpow.pop %v730
      %v732 = vmul.f32 %v721, 1.442695
      %v733 = vpow.pop %v732
      %v734 = vmul.f32 %v722, 1.442695
      %v735 = vpow.pop %v734
      %v736 = vmul.f32 %v723, 1.442695
      %v737 = vpow.pop %v736
      %v738 = vmul.f32 %v724, 1.442695
      %v739 = vpow.pop %v738
      %v740 = vmul.f32 %v725, 1.442695
      %v741 = vpow.pop %v740
      %v742 = vadd.f32 %v727, 1.0
      %v743 = vadd.f32 %v729, 1.0
      %v744 = vadd.f32 %v731, 1.0
      %v745 = vadd.f32 %v733, 1.0
      %v746 = vadd.f32 %v735, 1.0
      %v747 = vadd.f32 %v737, 1.0
      %v748 = vadd.f32 %v739, 1.0
      %v749 = vadd.f32 %v741, 1.0
      %v750 = vrcp.pop %v742
      %v751 = vrcp.pop %v743
      %v752 = vrcp.pop %v744
      %v753 = vrcp.pop %v745
      %v754 = vrcp.pop %v746
      %v755 = vrcp.pop %v747
      %v756 = vrcp.pop %v748
      %v757 = vrcp.pop %v749
      %vm758 = vcmask 7168
      %v759 = vsel %vm758, %v525, %v750
      %v760 = vsel %vm758, %v526, %v751
      %v761 = vsel %vm758, %v527, %v752
      %v762 = vsel %vm758, %v528, %v753
      %v763 = vsel %vm758, %v529, %v754
      %v764 = vsel %vm758, %v530, %v755
      %v765 = vsel %vm758, %v531, %v756
      %v766 = vsel %vm758, %v532, %v757
      %vm767 = vcmask 15360
      %768 = vst.msk [vmem:[%s172] sm:$0xff] %vm767, %v759
      %769 = vst.msk [vmem:[%s172 + $0x8] sm:$0xff] %vm767, %v760
      %770 = vst.msk [vmem:[%s172 + $0x10] sm:$0xff] %vm767, %v761
      %771 = vst.msk [vmem:[%s172 + $0x18] sm:$0xff] %vm767, %v762
      %772 = vst.msk [vmem:[%s172 + $0x20] sm:$0xff] %vm767, %v763
      %773 = vst.msk [vmem:[%s172 + $0x28] sm:$0xff] %vm767, %v764
      %774 = vst.msk [vmem:[%s172 + $0x30] sm:$0xff] %vm767, %v765
      %775 = vst.msk [vmem:[%s172 + $0x38] sm:$0xff] %vm767, %v766
      %s776 = smul.u32 8, %s14
      %p777 = scmp.lt.s32.totalorder %s776, 15
      %s778 = scalar_select %p777, %s776, 15
      %s779 = smul.addr %s778, 8
      %s780 = scalar_lea.vmem %s3, %s779
      // Predicated region
      $region33: #{tpu_custom_call.1} parent=31 // pred_check
        %p781 = pneg %p100
      $region34: #{tpu_custom_call.1} parent=31 // pred_check_branch
        %783 = sbr.rel (%p781) target = $region36
      $region35: #{tpu_custom_call.1} parent=31 // pred_region
        %s784 = smul.u32 8, %s14
      $region36: #{tpu_custom_call.1} parent=31 // pred_fallthru
        _
    $region32: #{tpu_custom_call.1} parent=5 // pred_fallthru
      _
    %p785 = scmp.le.s32.totalorder 2, %s9
    // Predicated region
    $region37: #{tpu_custom_call.1} parent=5 // pred_check
      %p786 = pneg %p785
    $region38: #{tpu_custom_call.1} parent=5 // pred_check_branch
      %788 = sbr.rel (%p786) target = $region40
    $region39: #{tpu_custom_call.1} parent=5 // pred_region
      %s789 = ssub.s32 %s9, 2
      // Predicated region
      $region41: #{tpu_custom_call.1} parent=39 // pred_check
        %p790 = pneg %p106
      $region42: #{tpu_custom_call.1} parent=39 // pred_check_branch
        %792 = sbr.rel (%p790) target = $region44
      $region43: #{tpu_custom_call.1} parent=39 // pred_region
        %s793 = smul.u32 8, %s15
        %p794 = scmp.lt.s32.totalorder %s793, 15
        %s795 = scalar_select %p794, %s793, 15
        %s796 = smul.addr %s795, 8
        %s797 = scalar_lea.vmem %s3, %s796
      $region44: #{tpu_custom_call.1} parent=39 // pred_fallthru
        _
    $region40: #{tpu_custom_call.1} parent=5 // pred_fallthru
      _
  $region6: #{tpu_custom_call.1} parent=0 // loop_footer
    %s13 = sadd.s32 1, %s9
  $region7: #{tpu_custom_call.1} parent=0 // loop_footer_branch
    %8 = sbr.rel target = $region3
  $region8: #{tpu_custom_call.1} parent=0 // loop_exit
    _

</llo_original>
